<compile_context>
chip_gen: v6e
topology: v6e:2x2x1
jax: 0.10.0
libtpu: 0.0.40
codegen_flags: <defaults>
</compile_context>

<pallas_src>
import jax
import jax.numpy as jnp
from jax.experimental import pallas as pl
from jax.experimental.pallas import tpu as pltpu


def _rup(n, m=8):
    return ((n + m - 1) // m) * m


def make_wavefront_rnn_kernel(n_layers, seq_len, batch, input_size, hidden_dim,
                              output_size):
    """Kernel closed over static layer/seq/batch/feature sizes."""
    L, S, B, I, H, O = n_layers, seq_len, batch, input_size, hidden_dim, output_size
    LH = L * H
    # Row offsets inside the packed weight slab (all 8-sublane aligned).
    r1 = _rup(I)                  # fused block RHS
    r2 = r1 + _rup(LH)            # fc weight
    r3 = r2 + _rup(H)             # folded RNN biases row
    r4 = r3 + 8                   # fc bias row

    def kernel(x_ref, w_ref, out_ref, hidden_ref):
        # ---- unpack the single packed weight slab (static sub-window loads) ----
        wih1 = w_ref[0:I, 0:H]              # (I, H)   layer-0 W_ih^T
        rhs_w = w_ref[r1:r1 + LH, 0:LH]     # (LH, LH) fused block recurrence RHS
        fcw = w_ref[r2:r2 + H, 0:O]         # (H, O)   fc weight^T
        brow = w_ref[r3:r3 + 1, 0:LH]       # (1, LH)  [b1 | b2 | ... | bL] folded
        fcb = w_ref[r4:r4 + 1, 0:O]         # (1, O)

        # ---- hoisted layer-0 input projection: one matmul, off the serial path.
        # x_ref is already time-major (row = t*B + b) -> no in-kernel row shuffles.
        xp1 = jnp.dot(x_ref[...], wih1,
                      preferred_element_type=jnp.float32) + brow[:, 0:H]  # (S*B, H)

        # Per-step addend [xp1_k | b2 | ... | bL], built once before the loop.
        if L > 1:
            addend_all = jnp.concatenate(
                [xp1, jnp.broadcast_to(brow[:, H:LH], (S * B, LH - H))], axis=-1)
        else:
            addend_all = xp1

        # ---- wavefront recurrence: S + L - 1 serial stages, fully unrolled ----
        h_all = jnp.zeros((B, LH), jnp.float32)   # [h_0 | h_1 | ... | h_{L-1}]
        outs = []
        for k in range(S + L - 1):
            if L - 1 <= k <= S - 1:
                # Fast path: every layer is active -> one matmul, one add, one tanh.
                res = jnp.dot(h_all, rhs_w, preferred_element_type=jnp.float32)
                h_all = jnp.tanh(res + addend_all[k * B:(k + 1) * B, :])
                outs.append(h_all[:, (L - 1) * H:])
            else:
                # Wavefront fill/drain: only update active layers, carry the rest.
                res = None if k == 0 else jnp.dot(
                    h_all, rhs_w, preferred_element_type=jnp.float32)
                pieces = []
                for l in range(L):
                    if l <= k <= S - 1 + l:        # layer l active (timestep k-l)
                        if l == 0:
                            add = xp1[k * B:(k + 1) * B, :]
                        else:
                            add = jnp.broadcast_to(brow[:, l * H:(l + 1) * H], (B, H))
                        pre = add if res is None else res[:, l * H:(l + 1) * H] + add
                        pieces.append(jnp.tanh(pre))
                    else:                          # inactive: state unchanged
                        pieces.append(h_all[:, l * H:(l + 1) * H])
                h_all = jnp.concatenate(pieces, axis=-1)
                if L - 1 <= k:                     # last layer produced a timestep
                    outs.append(h_all[:, (L - 1) * H:])

        # Final hidden state per layer, (L, B, H) -- matches torch's hidden output.
        for l in range(L):
            hidden_ref[l] = h_all[:, l * H:(l + 1) * H]

        # ---- FC head: one matmul over all rows, single dense store.
        # Output stays time-major; the batch-major reorder is a free wrapper reshape.
        last_tm = jnp.concatenate(outs, axis=0)            # (S*B, H)
        out_ref[...] = (jnp.dot(last_tm, fcw, preferred_element_type=jnp.float32)
                        + fcb)

    return kernel


def rnn_forward(x, rnn_params, fc_params, n_layers, hidden_dim, output_size):
    """x: (B, S, I) float32.  Returns (out (B*S, O), hidden (L, B, H))."""
    B, S, I = x.shape
    L, H, O = n_layers, hidden_dim, output_size
    LH = L * H
    assert LH <= 128, "keep fused K <= 128 so v5e's MXU does a single pass"

    r1 = _rup(I)
    r2 = r1 + _rup(LH)
    r3 = r2 + _rup(H)
    r4 = r3 + 8
    n_rows = r4 + 8
    width = max(LH, H, O, I)

    fc_w, fc_b = fc_params

    # ---- pack all weights into one f32 slab -> 2 kernel inputs total ----
    rhs = jnp.zeros((LH, LH), jnp.float32)
    brow = jnp.zeros((LH,), jnp.float32)
    for l in range(L):
        w_ih, w_hh, b_ih, b_hh = rnn_params[l]
        rhs = rhs.at[l * H:(l + 1) * H, l * H:(l + 1) * H].set(
            w_hh.T.astype(jnp.float32))
        if l >= 1:
            rhs = rhs.at[(l - 1) * H:l * H, l * H:(l + 1) * H].set(
                w_ih.T.astype(jnp.float32))
        brow = brow.at[l * H:(l + 1) * H].set((b_ih + b_hh).astype(jnp.float32))

    Wp = jnp.zeros((n_rows, width), jnp.float32)
    Wp = Wp.at[0:I, 0:H].set(rnn_params[0][0].T.astype(jnp.float32))
    Wp = Wp.at[r1:r1 + LH, 0:LH].set(rhs)
    Wp = Wp.at[r2:r2 + H, 0:O].set(fc_w.T.astype(jnp.float32))
    Wp = Wp.at[r3, 0:LH].set(brow)
    Wp = Wp.at[r4, 0:O].set(fc_b.astype(jnp.float32))

    # Time-major flat input (row = t*B + b): frees the kernel of all row shuffles.
    x_tm = jnp.transpose(x, (1, 0, 2)).reshape(S * B, I).astype(jnp.float32)

    kernel = make_wavefront_rnn_kernel(L, S, B, I, H, O)
    vmem = pl.BlockSpec(memory_space=pltpu.MemorySpace.VMEM)

    out_tm, hidden = pl.pallas_call(
        kernel,
        out_shape=(jax.ShapeDtypeStruct((S * B, O), jnp.float32),
                   jax.ShapeDtypeStruct((L, B, H), jnp.float32)),
        in_specs=[vmem, vmem],
        out_specs=(vmem, vmem),
    )(x_tm, Wp)

    # time-major -> torch batch-major flatten (row = b*S + t); free layout plumbing.
    out = out_tm.reshape(S, B, O).transpose(1, 0, 2).reshape(B * S, O)
    return out, hidden


if __name__ == "__main__":
    # Small shapes consistent with the module's forward.
    input_size, output_size, hidden_dim, n_layers = 16, 16, 32, 2
    B, S = 2, 8

    key = jax.random.PRNGKey(0)
    keys = jax.random.split(key, 4 * n_layers + 3)
    bound = 1.0 / jnp.sqrt(hidden_dim)

    rnn_params = []
    ki = 0
    for l in range(n_layers):
        in_dim = input_size if l == 0 else hidden_dim
        w_ih = jax.random.uniform(keys[ki], (hidden_dim, in_dim),
                                  minval=-bound, maxval=bound); ki += 1
        w_hh = jax.random.uniform(keys[ki], (hidden_dim, hidden_dim),
                                  minval=-bound, maxval=bound); ki += 1
        b_ih = jax.random.uniform(keys[ki], (hidden_dim,),
                                  minval=-bound, maxval=bound); ki += 1
        b_hh = jax.random.uniform(keys[ki], (hidden_dim,),
                                  minval=-bound, maxval=bound); ki += 1
        rnn_params.append((w_ih, w_hh, b_ih, b_hh))
    fc_w = jax.random.uniform(keys[ki], (output_size, hidden_dim),
                              minval=-bound, maxval=bound); ki += 1
    fc_b = jax.random.uniform(keys[ki], (output_size,),
                              minval=-bound, maxval=bound); ki += 1
    x = jax.random.normal(keys[ki], (B, S, input_size), jnp.float32)

    out, hidden = rnn_forward(x, rnn_params, (fc_w, fc_b),
                              n_layers, hidden_dim, output_size)
    jax.block_until_ready((out, hidden))

    # Pure-JAX reference of the PyTorch semantics for verification.
    def ref_forward(x):
        layer_in = x
        hs_final = []
        for l in range(n_layers):
            w_ih, w_hh, b_ih, b_hh = rnn_params[l]
            hl = jnp.zeros((B, hidden_dim), jnp.float32)
            outs = []
            for t in range(S):
                hl = jnp.tanh(layer_in[:, t] @ w_ih.T + b_ih
                              + hl @ w_hh.T + b_hh)
                outs.append(hl)
            layer_in = jnp.stack(outs, axis=1)
            hs_final.append(hl)
        out_ref = layer_in.reshape(-1, hidden_dim) @ fc_w.T + fc_b
        return out_ref, jnp.stack(hs_final, axis=0)

    ref_out, ref_hidden = ref_forward(x)
    assert out.shape == (B * S, output_size)
    assert hidden.shape == (n_layers, B, hidden_dim)
    assert jnp.allclose(out, ref_out, atol=1e-5, rtol=1e-5)
    assert jnp.allclose(hidden, ref_hidden, atol=1e-5, rtol=1e-5)
    print("KERNEL_OK")
</pallas_src>

<mosaic_0001>
module attributes {stable_mosaic.version = 11 : i64} {
  func.func @kernel(%arg0: memref<16x16xf32, #tpu.memory_space<vmem>>, %arg1: memref<128x64xf32, #tpu.memory_space<vmem>>, %arg2: memref<16x16xf32, #tpu.memory_space<vmem>>, %arg3: memref<2x2x32xf32, #tpu.memory_space<vmem>>) attributes {dimension_semantics = [], scalar_prefetch = 0 : i64, scratch_operands = 0 : i64, tpu.core_type = #tpu.core_type<tc>} {
    %c0 = arith.constant 0 : index
    %c0_0 = arith.constant 0 : index
    %0 = vector.load %arg1[%c0, %c0_0] : memref<128x64xf32, #tpu.memory_space<vmem>>, vector<16x32xf32>
    %c16 = arith.constant 16 : index
    %c0_1 = arith.constant 0 : index
    %1 = vector.load %arg1[%c16, %c0_1] : memref<128x64xf32, #tpu.memory_space<vmem>>, vector<64x64xf32>
    %c80 = arith.constant 80 : index
    %c0_2 = arith.constant 0 : index
    %2 = vector.load %arg1[%c80, %c0_2] : memref<128x64xf32, #tpu.memory_space<vmem>>, vector<32x16xf32>
    %c112 = arith.constant 112 : index
    %c0_3 = arith.constant 0 : index
    %3 = vector.load %arg1[%c112, %c0_3] : memref<128x64xf32, #tpu.memory_space<vmem>>, vector<1x64xf32>
    %c120 = arith.constant 120 : index
    %c0_4 = arith.constant 0 : index
    %4 = vector.load %arg1[%c120, %c0_4] : memref<128x64xf32, #tpu.memory_space<vmem>>, vector<1x16xf32>
    %c0_5 = arith.constant 0 : index
    %c0_6 = arith.constant 0 : index
    %5 = vector.load %arg0[%c0_5, %c0_6] : memref<16x16xf32, #tpu.memory_space<vmem>>, vector<16x16xf32>
    %cst = arith.constant dense<0.000000e+00> : vector<16x32xf32>
    %6 = tpu.matmul %5, %0, %cst {dimension_numbers = #tpu.dot_dimension_numbers<[1], [0], [0], [1], [0, 0, 1, 1], [], []>} : vector<16x16xf32>, vector<16x32xf32>, vector<16x32xf32> -> vector<16x32xf32>
    %7 = vector.extract_strided_slice %3 {offsets = [0, 0], sizes = [1, 32], strides = [1, 1]} : vector<1x64xf32> to vector<1x32xf32>
    %8 = vector.broadcast %7 : vector<1x32xf32> to vector<16x32xf32>
    %9 = arith.addf %6, %8 : vector<16x32xf32>
    %10 = vector.extract_strided_slice %3 {offsets = [0, 32], sizes = [1, 32], strides = [1, 1]} : vector<1x64xf32> to vector<1x32xf32>
    %11 = vector.shape_cast %10 : vector<1x32xf32> to vector<1x32xf32>
    %12 = vector.broadcast %11 : vector<1x32xf32> to vector<16x32xf32>
    %13 = tpu.concatenate %9, %12 in 1 : vector<16x32xf32>, vector<16x32xf32> -> vector<16x64xf32>
    %cst_7 = arith.constant 0.000000e+00 : f32
    %14 = vector.broadcast %cst_7 : f32 to vector<2x64xf32>
    %15 = vector.extract_strided_slice %9 {offsets = [0, 0], sizes = [2, 32], strides = [1, 1]} : vector<16x32xf32> to vector<2x32xf32>
    %16 = math.tanh %15 : vector<2x32xf32>
    %17 = vector.extract_strided_slice %14 {offsets = [0, 32], sizes = [2, 32], strides = [1, 1]} : vector<2x64xf32> to vector<2x32xf32>
    %18 = tpu.concatenate %16, %17 in 1 : vector<2x32xf32>, vector<2x32xf32> -> vector<2x64xf32>
    %cst_8 = arith.constant dense<0.000000e+00> : vector<2x64xf32>
    %19 = tpu.matmul %18, %1, %cst_8 {dimension_numbers = #tpu.dot_dimension_numbers<[1], [0], [0], [1], [0, 0, 1, 1], [], []>} : vector<2x64xf32>, vector<64x64xf32>, vector<2x64xf32> -> vector<2x64xf32>
    %20 = vector.extract_strided_slice %13 {offsets = [2, 0], sizes = [2, 64], strides = [1, 1]} : vector<16x64xf32> to vector<2x64xf32>
    %21 = arith.addf %19, %20 : vector<2x64xf32>
    %22 = math.tanh %21 : vector<2x64xf32>
    %23 = vector.extract_strided_slice %22 {offsets = [0, 32], sizes = [2, 32], strides = [1, 1]} : vector<2x64xf32> to vector<2x32xf32>
    %cst_9 = arith.constant dense<0.000000e+00> : vector<2x64xf32>
    %24 = tpu.matmul %22, %1, %cst_9 {dimension_numbers = #tpu.dot_dimension_numbers<[1], [0], [0], [1], [0, 0, 1, 1], [], []>} : vector<2x64xf32>, vector<64x64xf32>, vector<2x64xf32> -> vector<2x64xf32>
    %25 = vector.extract_strided_slice %13 {offsets = [4, 0], sizes = [2, 64], strides = [1, 1]} : vector<16x64xf32> to vector<2x64xf32>
    %26 = arith.addf %24, %25 : vector<2x64xf32>
    %27 = math.tanh %26 : vector<2x64xf32>
    %28 = vector.extract_strided_slice %27 {offsets = [0, 32], sizes = [2, 32], strides = [1, 1]} : vector<2x64xf32> to vector<2x32xf32>
    %cst_10 = arith.constant dense<0.000000e+00> : vector<2x64xf32>
    %29 = tpu.matmul %27, %1, %cst_10 {dimension_numbers = #tpu.dot_dimension_numbers<[1], [0], [0], [1], [0, 0, 1, 1], [], []>} : vector<2x64xf32>, vector<64x64xf32>, vector<2x64xf32> -> vector<2x64xf32>
    %30 = vector.extract_strided_slice %13 {offsets = [6, 0], sizes = [2, 64], strides = [1, 1]} : vector<16x64xf32> to vector<2x64xf32>
    %31 = arith.addf %29, %30 : vector<2x64xf32>
    %32 = math.tanh %31 : vector<2x64xf32>
    %33 = vector.extract_strided_slice %32 {offsets = [0, 32], sizes = [2, 32], strides = [1, 1]} : vector<2x64xf32> to vector<2x32xf32>
    %cst_11 = arith.constant dense<0.000000e+00> : vector<2x64xf32>
    %34 = tpu.matmul %32, %1, %cst_11 {dimension_numbers = #tpu.dot_dimension_numbers<[1], [0], [0], [1], [0, 0, 1, 1], [], []>} : vector<2x64xf32>, vector<64x64xf32>, vector<2x64xf32> -> vector<2x64xf32>
    %35 = vector.extract_strided_slice %13 {offsets = [8, 0], sizes = [2, 64], strides = [1, 1]} : vector<16x64xf32> to vector<2x64xf32>
    %36 = arith.addf %34, %35 : vector<2x64xf32>
    %37 = math.tanh %36 : vector<2x64xf32>
    %38 = vector.extract_strided_slice %37 {offsets = [0, 32], sizes = [2, 32], strides = [1, 1]} : vector<2x64xf32> to vector<2x32xf32>
    %cst_12 = arith.constant dense<0.000000e+00> : vector<2x64xf32>
    %39 = tpu.matmul %37, %1, %cst_12 {dimension_numbers = #tpu.dot_dimension_numbers<[1], [0], [0], [1], [0, 0, 1, 1], [], []>} : vector<2x64xf32>, vector<64x64xf32>, vector<2x64xf32> -> vector<2x64xf32>
    %40 = vector.extract_strided_slice %13 {offsets = [10, 0], sizes = [2, 64], strides = [1, 1]} : vector<16x64xf32> to vector<2x64xf32>
    %41 = arith.addf %39, %40 : vector<2x64xf32>
    %42 = math.tanh %41 : vector<2x64xf32>
    %43 = vector.extract_strided_slice %42 {offsets = [0, 32], sizes = [2, 32], strides = [1, 1]} : vector<2x64xf32> to vector<2x32xf32>
    %cst_13 = arith.constant dense<0.000000e+00> : vector<2x64xf32>
    %44 = tpu.matmul %42, %1, %cst_13 {dimension_numbers = #tpu.dot_dimension_numbers<[1], [0], [0], [1], [0, 0, 1, 1], [], []>} : vector<2x64xf32>, vector<64x64xf32>, vector<2x64xf32> -> vector<2x64xf32>
    %45 = vector.extract_strided_slice %13 {offsets = [12, 0], sizes = [2, 64], strides = [1, 1]} : vector<16x64xf32> to vector<2x64xf32>
    %46 = arith.addf %44, %45 : vector<2x64xf32>
    %47 = math.tanh %46 : vector<2x64xf32>
    %48 = vector.extract_strided_slice %47 {offsets = [0, 32], sizes = [2, 32], strides = [1, 1]} : vector<2x64xf32> to vector<2x32xf32>
    %cst_14 = arith.constant dense<0.000000e+00> : vector<2x64xf32>
    %49 = tpu.matmul %47, %1, %cst_14 {dimension_numbers = #tpu.dot_dimension_numbers<[1], [0], [0], [1], [0, 0, 1, 1], [], []>} : vector<2x64xf32>, vector<64x64xf32>, vector<2x64xf32> -> vector<2x64xf32>
    %50 = vector.extract_strided_slice %13 {offsets = [14, 0], sizes = [2, 64], strides = [1, 1]} : vector<16x64xf32> to vector<2x64xf32>
    %51 = arith.addf %49, %50 : vector<2x64xf32>
    %52 = math.tanh %51 : vector<2x64xf32>
    %53 = vector.extract_strided_slice %52 {offsets = [0, 32], sizes = [2, 32], strides = [1, 1]} : vector<2x64xf32> to vector<2x32xf32>
    %cst_15 = arith.constant dense<0.000000e+00> : vector<2x64xf32>
    %54 = tpu.matmul %52, %1, %cst_15 {dimension_numbers = #tpu.dot_dimension_numbers<[1], [0], [0], [1], [0, 0, 1, 1], [], []>} : vector<2x64xf32>, vector<64x64xf32>, vector<2x64xf32> -> vector<2x64xf32>
    %55 = vector.extract_strided_slice %52 {offsets = [0, 0], sizes = [2, 32], strides = [1, 1]} : vector<2x64xf32> to vector<2x32xf32>
    %56 = vector.extract_strided_slice %3 {offsets = [0, 32], sizes = [1, 32], strides = [1, 1]} : vector<1x64xf32> to vector<1x32xf32>
    %57 = vector.shape_cast %56 : vector<1x32xf32> to vector<1x32xf32>
    %58 = vector.broadcast %57 : vector<1x32xf32> to vector<2x32xf32>
    %59 = vector.extract_strided_slice %54 {offsets = [0, 32], sizes = [2, 32], strides = [1, 1]} : vector<2x64xf32> to vector<2x32xf32>
    %60 = arith.addf %59, %58 : vector<2x32xf32>
    %61 = math.tanh %60 : vector<2x32xf32>
    %62 = tpu.concatenate %55, %61 in 1 : vector<2x32xf32>, vector<2x32xf32> -> vector<2x64xf32>
    %63 = vector.extract_strided_slice %62 {offsets = [0, 32], sizes = [2, 32], strides = [1, 1]} : vector<2x64xf32> to vector<2x32xf32>
    %64 = vector.extract_strided_slice %62 {offsets = [0, 0], sizes = [2, 32], strides = [1, 1]} : vector<2x64xf32> to vector<2x32xf32>
    %c0_16 = arith.constant 0 : index
    %c0_17 = arith.constant 0 : index
    %c0_18 = arith.constant 0 : index
    %65 = vector.load %arg3[%c0_16, %c0_17, %c0_18] : memref<2x2x32xf32, #tpu.memory_space<vmem>>, vector<1x2x32xf32>
    %66 = vector.shape_cast %65 : vector<1x2x32xf32> to vector<2x32xf32>
    %67 = vector.shape_cast %64 : vector<2x32xf32> to vector<1x2x32xf32>
    tpu.vector_store %arg3[%c0_16, %c0_17, %c0_18], %67 {strides = array<i32>} : memref<2x2x32xf32, #tpu.memory_space<vmem>>, vector<1x2x32xf32>,
    %68 = vector.extract_strided_slice %62 {offsets = [0, 32], sizes = [2, 32], strides = [1, 1]} : vector<2x64xf32> to vector<2x32xf32>
    %c1 = arith.constant 1 : index
    %c0_19 = arith.constant 0 : index
    %c0_20 = arith.constant 0 : index
    %69 = vector.load %arg3[%c1, %c0_19, %c0_20] : memref<2x2x32xf32, #tpu.memory_space<vmem>>, vector<1x2x32xf32>
    %70 = vector.shape_cast %69 : vector<1x2x32xf32> to vector<2x32xf32>
    %71 = vector.shape_cast %68 : vector<2x32xf32> to vector<1x2x32xf32>
    tpu.vector_store %arg3[%c1, %c0_19, %c0_20], %71 {strides = array<i32>} : memref<2x2x32xf32, #tpu.memory_space<vmem>>, vector<1x2x32xf32>,
    %72 = tpu.concatenate %23, %28, %33, %38, %43, %48, %53, %63 in 0 : vector<2x32xf32>, vector<2x32xf32>, vector<2x32xf32>, vector<2x32xf32>, vector<2x32xf32>, vector<2x32xf32>, vector<2x32xf32>, vector<2x32xf32> -> vector<16x32xf32>
    %cst_21 = arith.constant dense<0.000000e+00> : vector<16x16xf32>
    %73 = tpu.matmul %72, %2, %cst_21 {dimension_numbers = #tpu.dot_dimension_numbers<[1], [0], [0], [1], [0, 0, 1, 1], [], []>} : vector<16x32xf32>, vector<32x16xf32>, vector<16x16xf32> -> vector<16x16xf32>
    %74 = vector.broadcast %4 : vector<1x16xf32> to vector<16x16xf32>
    %75 = arith.addf %73, %74 : vector<16x16xf32>
    %c0_22 = arith.constant 0 : index
    %c0_23 = arith.constant 0 : index
    %76 = vector.load %arg2[%c0_22, %c0_23] : memref<16x16xf32, #tpu.memory_space<vmem>>, vector<16x16xf32>
    tpu.vector_store %arg2[%c0_22, %c0_23], %75 {strides = array<i32>} : memref<16x16xf32, #tpu.memory_space<vmem>>, vector<16x16xf32>,
    return
  }
}

</mosaic_0001>

<llo_original>
// kernel: tpu_custom_call.1
$region0: #{tpu_custom_call.1}
  #allocation0 [shape = 'u32[]', space=smem, size = 0x4, offset = 0x4, fixed_abs, tag = 'smem constant byte address 0x4 - core index']
  #allocation1 [shape = 'u32[144,128]{1,0:T(1,128)}', space=vmem, size = 0x12000, scoped, tag = 'internal scratch']
  %s0 = inlined_call_operand.vmem [shape: f32[16,16], index: 0, kind: input, shape index: {}]
  %s1 = inlined_call_operand.vmem [shape: f32[128,64], index: 1, kind: input, shape index: {}]
  %s2 = inlined_call_operand.hbm [shape: f32[16,16], index: 2, kind: output, shape index: {0}]
  %s3 = inlined_call_operand.hbm [shape: f32[2,2,32], index: 3, kind: output, shape index: {1}]
  %4 = xla_tuple %s2, %s3
  %s5 = sld [smem:[#allocation0]]
  $region26: #{tpu_custom_call.1} parent=0
    _
  %s7 = ssub.s32 1, %s5
  %s8 = scalar_select 0, %s7, %s5
  $region1: #{tpu_custom_call.1} parent=0
    #allocation2 [shape = 'u8[8192]{0}', space=vmem, size = 0x2000, scoped, tag = 'output window, operand 0, single buffered']
    #allocation3 [shape = 's32[1]{0}', space=sflag, size = 0x4, scoped, tag = 'scoped memory for tpu_custom_call.1']
    #allocation4 [shape = 'u8[2048]{0}', space=vmem, size = 0x800, scoped, tag = 'output window, operand 1, single buffered']
    #allocation5 [shape = 's32[1]{0}', space=sflag, size = 0x4, scoped, tag = 'scoped memory for tpu_custom_call.1']
    %9 = vsyncpa [#allocation3], 0
    %10 = vsyncpa [#allocation5], 0
    // Predicated region
    $region2: #{tpu_custom_call.1} parent=1 // pred_check
      _
    $region3: #{tpu_custom_call.1} parent=1 // pred_check_branch
      %12 = sbr.rel (0) target = $region5
    $region4: #{tpu_custom_call.1} parent=1 // pred_region
      _
    $region5: #{tpu_custom_call.1} parent=1 // pred_fallthru
      _
    // Predicated region
    $region6: #{tpu_custom_call.1} parent=1 // pred_check
      _
    $region7: #{tpu_custom_call.1} parent=1 // pred_check_branch
      %14 = sbr.rel (0) target = $region9
    $region8: #{tpu_custom_call.1} parent=1 // pred_region
      _
    $region9: #{tpu_custom_call.1} parent=1 // pred_fallthru
      _
    %v15 = vld [vmem:[%s1] sm:$0xff]
    %v16 = vld [vmem:[%s1 + $0x8] sm:$0xff]
    %v17 = vld [vmem:[%s1 + $0x10] sm:$0xff]
    %v18 = vld [vmem:[%s1 + $0x18] sm:$0xff]
    %v19 = vld [vmem:[%s1 + $0x20] sm:$0xff]
    %v20 = vld [vmem:[%s1 + $0x28] sm:$0xff]
    %v21 = vld [vmem:[%s1 + $0x30] sm:$0xff]
    %v22 = vld [vmem:[%s1 + $0x38] sm:$0xff]
    %v23 = vld [vmem:[%s1 + $0x40] sm:$0xff]
    %v24 = vld [vmem:[%s1 + $0x48] sm:$0xff]
    %v25 = vld [vmem:[%s1 + $0x50] sm:$0xff]
    %v26 = vld [vmem:[%s1 + $0x58] sm:$0xff]
    %v27 = vld [vmem:[%s1 + $0x60] sm:$0xff]
    %v28 = vld [vmem:[%s1 + $0x68] sm:$0xff]
    %v29 = vld [vmem:[%s1 + $0x70] sm:$0x1]
    %v30 = vld [vmem:[%s1 + $0x78] sm:$0x1]
    %v31 = vld [vmem:[%s0] sm:$0xff]
    %v32 = vld [vmem:[%s0 + $0x8] sm:$0xff]
    %v33 = vlaneseq
    %v34 = vshrl.u32 %v33, 7
    %v35 = vsub.s32 0, %v34
    %v36 = vrot.slane %v29, %v35
    %vm37 = vcmask 130048
    %v39 = vsel %vm37, %v31, 0
    %v42 = vsel %vm37, %v32, 0
    %44 = vmatprep.subr.mxu0 0.0
    %45 = vmatpush1.msra.mxu0 0.0
    %46 = vmatprep.subr.mxu0 0.0
    %47 = vmatpush1.msra.mxu0 0.0
    %48 = vmatprep.subr.mxu0 0.0
    %49 = vmatpush1.msra.mxu0 0.0
    %50 = vmatprep.subr.mxu0 0.0
    %51 = vmatpush1.msra.mxu0 0.0
    %52 = vmatprep.subr.mxu0 0.0
    %53 = vmatpush1.msra.mxu0 0.0
    %54 = vmatprep.subr.mxu0 0.0
    %55 = vmatpush1.msra.mxu0 0.0
    %56 = vmatprep.subr.mxu0 0.0
    %57 = vmatpush1.msra.mxu0 0.0
    %58 = vmatprep.subr.mxu0 0.0
    %59 = vmatpush1.msra.mxu0 0.0
    %60 = vmatprep.subr.mxu0 0.0
    %61 = vmatpush1.msra.mxu0 0.0
    %62 = vmatprep.subr.mxu0 0.0
    %63 = vmatpush1.msra.mxu0 0.0
    %64 = vmatprep.subr.mxu0 0.0
    %65 = vmatpush1.msra.mxu0 0.0
    %66 = vmatprep.subr.mxu0 0.0
    %67 = vmatpush1.msra.mxu0 0.0
    %68 = vmatprep.subr.mxu0 0.0
    %69 = vmatpush1.msra.mxu0 0.0
    %70 = vmatprep.subr.mxu0 0.0
    %71 = vmatpush1.msra.mxu0 0.0
    %72 = vmatprep.subr.mxu0 0.0
    %73 = vmatpush1.msra.mxu0 %v16
    %74 = vmatprep.subr.mxu0 0.0
    %75 = vmatpush1.msra.mxu0 %v15
    %76 = vmatprep.subr.mxu0 0.0
    %77 = vmatpush2.msra.mxu0 0.0
    %78 = vmatprep.subr.mxu0 0.0
    %79 = vmatpush2.msra.mxu0 0.0
    %80 = vmatprep.subr.mxu0 0.0
    %81 = vmatpush2.msra.mxu0 0.0
    %82 = vmatprep.subr.mxu0 0.0
    %83 = vmatpush2.msra.mxu0 0.0
    %84 = vmatprep.subr.mxu0 0.0
    %85 = vmatpush2.msra.mxu0 0.0
    %86 = vmatprep.subr.mxu0 0.0
    %87 = vmatpush2.msra.mxu0 0.0
    %88 = vmatprep.subr.mxu0 0.0
    %89 = vmatpush2.msra.mxu0 0.0
    %90 = vmatprep.subr.mxu0 0.0
    %91 = vmatpush2.msra.mxu0 0.0
    %92 = vmatprep.subr.mxu0 0.0
    %93 = vmatpush2.msra.mxu0 0.0
    %94 = vmatprep.subr.mxu0 0.0
    %95 = vmatpush2.msra.mxu0 0.0
    %96 = vmatprep.subr.mxu0 0.0
    %97 = vmatpush2.msra.mxu0 0.0
    %98 = vmatprep.subr.mxu0 0.0
    %99 = vmatpush2.msra.mxu0 0.0
    %100 = vmatprep.subr.mxu0 0.0
    %101 = vmatpush2.msra.mxu0 0.0
    %102 = vmatprep.subr.mxu0 0.0
    %103 = vmatpush2.msra.mxu0 0.0
    %104 = vmatprep.subr.mxu0 0.0
    %105 = vmatpush2.msra.mxu0 0.0
    %106 = vmatprep.subr.mxu0 0.0
    %107 = vmatpush2.msra.mxu0 0.0
    %108 = vmatprep.mubr.f32.mxu0 0.0
    %109 = vmatmul.mubr.f32.gmra.mxu0 %v39
    %v110 = vpop.f32.mrf.mxu0
    %v111 = vadd.f32 %v36, %v110
    %v112 = vpop.f32.mrf.mxu0
    %113 = vmatprep.mubr.f32.mxu0 0.0
    %114 = vmatmul.mubr.f32.gmra.mxu0 %v42
    %v115 = vpop.f32.mrf.mxu0
    %v116 = vadd.f32 %v36, %v115
    %v117 = vpop.f32.mrf.mxu0
    %118 = vdwg.mxu0
    %vm119 = vcmask 261120
    %v120 = vsel %vm119, %v111, %v36
    %v121 = vsel %vm119, %v116, %v36
    %v122 = vtanh.pop %v111
    %v123 = vsel %vm119, %v122, 0.0
    %v125 = vrot.slane %v120, 2
    %vm127 = vcmask 523264
    %v129 = vsel %vm127, %v123, 0
    %131 = vmatprep.subr.mxu0 0.0
    %132 = vmatpush1.msra.mxu0 0.0
    %133 = vmatprep.subr.mxu0 0.0
    %134 = vmatpush1.msra.mxu0 0.0
    %135 = vmatprep.subr.mxu0 0.0
    %136 = vmatpush1.msra.mxu0 0.0
    %137 = vmatprep.subr.mxu0 0.0
    %138 = vmatpush1.msra.mxu0 0.0
    %139 = vmatprep.subr.mxu0 0.0
    %140 = vmatpush1.msra.mxu0 0.0
    %141 = vmatprep.subr.mxu0 0.0
    %142 = vmatpush1.msra.mxu0 0.0
    %143 = vmatprep.subr.mxu0 0.0
    %144 = vmatpush1.msra.mxu0 0.0
    %145 = vmatprep.subr.mxu0 0.0
    %146 = vmatpush1.msra.mxu0 0.0
    %147 = vmatprep.subr.mxu0 0.0
    %148 = vmatpush1.msra.mxu0 %v24
    %149 = vmatprep.subr.mxu0 0.0
    %150 = vmatpush1.msra.mxu0 %v23
    %151 = vmatprep.subr.mxu0 0.0
    %152 = vmatpush1.msra.mxu0 %v22
    %153 = vmatprep.subr.mxu0 0.0
    %154 = vmatpush1.msra.mxu0 %v21
    %155 = vmatprep.subr.mxu0 0.0
    %156 = vmatpush1.msra.mxu0 %v20
    %157 = vmatprep.subr.mxu0 0.0
    %158 = vmatpush1.msra.mxu0 %v19
    %159 = vmatprep.subr.mxu0 0.0
    %160 = vmatpush1.msra.mxu0 %v18
    %161 = vmatprep.subr.mxu0 0.0
    %162 = vmatpush1.msra.mxu0 %v17
    %163 = vmatprep.subr.mxu0 0.0
    %164 = vmatpush2.msra.mxu0 0.0
    %165 = vmatprep.subr.mxu0 0.0
    %166 = vmatpush2.msra.mxu0 0.0
    %167 = vmatprep.subr.mxu0 0.0
    %168 = vmatpush2.msra.mxu0 0.0
    %169 = vmatprep.subr.mxu0 0.0
    %170 = vmatpush2.msra.mxu0 0.0
    %171 = vmatprep.subr.mxu0 0.0
    %172 = vmatpush2.msra.mxu0 0.0
    %173 = vmatprep.subr.mxu0 0.0
    %174 = vmatpush2.msra.mxu0 0.0
    %175 = vmatprep.subr.mxu0 0.0
    %176 = vmatpush2.msra.mxu0 0.0
    %177 = vmatprep.subr.mxu0 0.0
    %178 = vmatpush2.msra.mxu0 0.0
    %179 = vmatprep.subr.mxu0 0.0
    %180 = vmatpush2.msra.mxu0 0.0
    %181 = vmatprep.subr.mxu0 0.0
    %182 = vmatpush2.msra.mxu0 0.0
    %183 = vmatprep.subr.mxu0 0.0
    %184 = vmatpush2.msra.mxu0 0.0
    %185 = vmatprep.subr.mxu0 0.0
    %186 = vmatpush2.msra.mxu0 0.0
    %187 = vmatprep.subr.mxu0 0.0
    %188 = vmatpush2.msra.mxu0 0.0
    %189 = vmatprep.subr.mxu0 0.0
    %190 = vmatpush2.msra.mxu0 0.0
    %191 = vmatprep.subr.mxu0 0.0
    %192 = vmatpush2.msra.mxu0 0.0
    %193 = vmatprep.subr.mxu0 0.0
    %194 = vmatpush2.msra.mxu0 0.0
    %195 = vmatprep.mubr.f32.mxu0 0.0
    %196 = vmatmul.mubr.f32.gmra.mxu0 %v129
    %v197 = vpop.f32.mrf.mxu0
    %v198 = vadd.f32 %v125, %v197
    %v199 = vpop.f32.mrf.mxu0
    %200 = vdwg.mxu0
    %v201 = vtanh.pop %v198
    %v202 = vrot.slane %v120, 4
    %v205 = vsel %vm127, %v201, 0
    %207 = vmatprep.subr.mxu0 0.0
    %208 = vmatpush1.msra.mxu0 0.0
    %209 = vmatprep.subr.mxu0 0.0
    %210 = vmatpush1.msra.mxu0 0.0
    %211 = vmatprep.subr.mxu0 0.0
    %212 = vmatpush1.msra.mxu0 0.0
    %213 = vmatprep.subr.mxu0 0.0
    %214 = vmatpush1.msra.mxu0 0.0
    %215 = vmatprep.subr.mxu0 0.0
    %216 = vmatpush1.msra.mxu0 0.0
    %217 = vmatprep.subr.mxu0 0.0
    %218 = vmatpush1.msra.mxu0 0.0
    %219 = vmatprep.subr.mxu0 0.0
    %220 = vmatpush1.msra.mxu0 0.0
    %221 = vmatprep.subr.mxu0 0.0
    %222 = vmatpush1.msra.mxu0 0.0
    %223 = vmatprep.subr.mxu0 0.0
    %224 = vmatpush1.msra.mxu0 %v24
    %225 = vmatprep.subr.mxu0 0.0
    %226 = vmatpush1.msra.mxu0 %v23
    %227 = vmatprep.subr.mxu0 0.0
    %228 = vmatpush1.msra.mxu0 %v22
    %229 = vmatprep.subr.mxu0 0.0
    %230 = vmatpush1.msra.mxu0 %v21
    %231 = vmatprep.subr.mxu0 0.0
    %232 = vmatpush1.msra.mxu0 %v20
    %233 = vmatprep.subr.mxu0 0.0
    %234 = vmatpush1.msra.mxu0 %v19
    %235 = vmatprep.subr.mxu0 0.0
    %236 = vmatpush1.msra.mxu0 %v18
    %237 = vmatprep.subr.mxu0 0.0
    %238 = vmatpush1.msra.mxu0 %v17
    %239 = vmatprep.subr.mxu0 0.0
    %240 = vmatpush2.msra.mxu0 0.0
    %241 = vmatprep.subr.mxu0 0.0
    %242 = vmatpush2.msra.mxu0 0.0
    %243 = vmatprep.subr.mxu0 0.0
    %244 = vmatpush2.msra.mxu0 0.0
    %245 = vmatprep.subr.mxu0 0.0
    %246 = vmatpush2.msra.mxu0 0.0
    %247 = vmatprep.subr.mxu0 0.0
    %248 = vmatpush2.msra.mxu0 0.0
    %249 = vmatprep.subr.mxu0 0.0
    %250 = vmatpush2.msra.mxu0 0.0
    %251 = vmatprep.subr.mxu0 0.0
    %252 = vmatpush2.msra.mxu0 0.0
    %253 = vmatprep.subr.mxu0 0.0
    %254 = vmatpush2.msra.mxu0 0.0
    %255 = vmatprep.subr.mxu0 0.0
    %256 = vmatpush2.msra.mxu0 0.0
    %257 = vmatprep.subr.mxu0 0.0
    %258 = vmatpush2.msra.mxu0 0.0
    %259 = vmatprep.subr.mxu0 0.0
    %260 = vmatpush2.msra.mxu0 0.0
    %261 = vmatprep.subr.mxu0 0.0
    %262 = vmatpush2.msra.mxu0 0.0
    %263 = vmatprep.subr.mxu0 0.0
    %264 = vmatpush2.msra.mxu0 0.0
    %265 = vmatprep.subr.mxu0 0.0
    %266 = vmatpush2.msra.mxu0 0.0
    %267 = vmatprep.subr.mxu0 0.0
    %268 = vmatpush2.msra.mxu0 0.0
    %269 = vmatprep.subr.mxu0 0.0
    %270 = vmatpush2.msra.mxu0 0.0
    %271 = vmatprep.mubr.f32.mxu0 0.0
    %272 = vmatmul.mubr.f32.gmra.mxu0 %v205
    %v273 = vpop.f32.mrf.mxu0
    %v274 = vadd.f32 %v202, %v273
    %v275 = vpop.f32.mrf.mxu0
    %276 = vdwg.mxu0
    %v277 = vtanh.pop %v274
    %v278 = vrot.slane %v120, 6
    %v281 = vsel %vm127, %v277, 0
    %283 = vmatprep.subr.mxu0 0.0
    %284 = vmatpush1.msra.mxu0 0.0
    %285 = vmatprep.subr.mxu0 0.0
    %286 = vmatpush1.msra.mxu0 0.0
    %287 = vmatprep.subr.mxu0 0.0
    %288 = vmatpush1.msra.mxu0 0.0
    %289 = vmatprep.subr.mxu0 0.0
    %290 = vmatpush1.msra.mxu0 0.0
    %291 = vmatprep.subr.mxu0 0.0
    %292 = vmatpush1.msra.mxu0 0.0
    %293 = vmatprep.subr.mxu0 0.0
    %294 = vmatpush1.msra.mxu0 0.0
    %295 = vmatprep.subr.mxu0 0.0
    %296 = vmatpush1.msra.mxu0 0.0
    %297 = vmatprep.subr.mxu0 0.0
    %298 = vmatpush1.msra.mxu0 0.0
    %299 = vmatprep.subr.mxu0 0.0
    %300 = vmatpush1.msra.mxu0 %v24
    %301 = vmatprep.subr.mxu0 0.0
    %302 = vmatpush1.msra.mxu0 %v23
    %303 = vmatprep.subr.mxu0 0.0
    %304 = vmatpush1.msra.mxu0 %v22
    %305 = vmatprep.subr.mxu0 0.0
    %306 = vmatpush1.msra.mxu0 %v21
    %307 = vmatprep.subr.mxu0 0.0
    %308 = vmatpush1.msra.mxu0 %v20
    %309 = vmatprep.subr.mxu0 0.0
    %310 = vmatpush1.msra.mxu0 %v19
    %311 = vmatprep.subr.mxu0 0.0
    %312 = vmatpush1.msra.mxu0 %v18
    %313 = vmatprep.subr.mxu0 0.0
    %314 = vmatpush1.msra.mxu0 %v17
    %315 = vmatprep.subr.mxu0 0.0
    %316 = vmatpush2.msra.mxu0 0.0
    %317 = vmatprep.subr.mxu0 0.0
    %318 = vmatpush2.msra.mxu0 0.0
    %319 = vmatprep.subr.mxu0 0.0
    %320 = vmatpush2.msra.mxu0 0.0
    %321 = vmatprep.subr.mxu0 0.0
    %322 = vmatpush2.msra.mxu0 0.0
    %323 = vmatprep.subr.mxu0 0.0
    %324 = vmatpush2.msra.mxu0 0.0
    %325 = vmatprep.subr.mxu0 0.0
    %326 = vmatpush2.msra.mxu0 0.0
    %327 = vmatprep.subr.mxu0 0.0
    %328 = vmatpush2.msra.mxu0 0.0
    %329 = vmatprep.subr.mxu0 0.0
    %330 = vmatpush2.msra.mxu0 0.0
    %331 = vmatprep.subr.mxu0 0.0
    %332 = vmatpush2.msra.mxu0 0.0
    %333 = vmatprep.subr.mxu0 0.0
    %334 = vmatpush2.msra.mxu0 0.0
    %335 = vmatprep.subr.mxu0 0.0
    %336 = vmatpush2.msra.mxu0 0.0
    %337 = vmatprep.subr.mxu0 0.0
    %338 = vmatpush2.msra.mxu0 0.0
    %339 = vmatprep.subr.mxu0 0.0
    %340 = vmatpush2.msra.mxu0 0.0
    %341 = vmatprep.subr.mxu0 0.0
    %342 = vmatpush2.msra.mxu0 0.0
    %343 = vmatprep.subr.mxu0 0.0
    %344 = vmatpush2.msra.mxu0 0.0
    %345 = vmatprep.subr.mxu0 0.0
    %346 = vmatpush2.msra.mxu0 0.0
    %347 = vmatprep.mubr.f32.mxu0 0.0
    %348 = vmatmul.mubr.f32.gmra.mxu0 %v281
    %v349 = vpop.f32.mrf.mxu0
    %v350 = vadd.f32 %v278, %v349
    %v351 = vpop.f32.mrf.mxu0
    %352 = vdwg.mxu0
    %v353 = vtanh.pop %v350
    %v355 = vsel %vm127, %v353, 0
    %357 = vmatprep.subr.mxu0 0.0
    %358 = vmatpush1.msra.mxu0 0.0
    %359 = vmatprep.subr.mxu0 0.0
    %360 = vmatpush1.msra.mxu0 0.0
    %361 = vmatprep.subr.mxu0 0.0
    %362 = vmatpush1.msra.mxu0 0.0
    %363 = vmatprep.subr.mxu0 0.0
    %364 = vmatpush1.msra.mxu0 0.0
    %365 = vmatprep.subr.mxu0 0.0
    %366 = vmatpush1.msra.mxu0 0.0
    %367 = vmatprep.subr.mxu0 0.0
    %368 = vmatpush1.msra.mxu0 0.0
    %369 = vmatprep.subr.mxu0 0.0
    %370 = vmatpush1.msra.mxu0 0.0
    %371 = vmatprep.subr.mxu0 0.0
    %372 = vmatpush1.msra.mxu0 0.0
    %373 = vmatprep.subr.mxu0 0.0
    %374 = vmatpush1.msra.mxu0 %v24
    %375 = vmatprep.subr.mxu0 0.0
    %376 = vmatpush1.msra.mxu0 %v23
    %377 = vmatprep.subr.mxu0 0.0
    %378 = vmatpush1.msra.mxu0 %v22
    %379 = vmatprep.subr.mxu0 0.0
    %380 = vmatpush1.msra.mxu0 %v21
    %381 = vmatprep.subr.mxu0 0.0
    %382 = vmatpush1.msra.mxu0 %v20
    %383 = vmatprep.subr.mxu0 0.0
    %384 = vmatpush1.msra.mxu0 %v19
    %385 = vmatprep.subr.mxu0 0.0
    %386 = vmatpush1.msra.mxu0 %v18
    %387 = vmatprep.subr.mxu0 0.0
    %388 = vmatpush1.msra.mxu0 %v17
    %389 = vmatprep.subr.mxu0 0.0
    %390 = vmatpush2.msra.mxu0 0.0
    %391 = vmatprep.subr.mxu0 0.0
    %392 = vmatpush2.msra.mxu0 0.0
    %393 = vmatprep.subr.mxu0 0.0
    %394 = vmatpush2.msra.mxu0 0.0
    %395 = vmatprep.subr.mxu0 0.0
    %396 = vmatpush2.msra.mxu0 0.0
    %397 = vmatprep.subr.mxu0 0.0
    %398 = vmatpush2.msra.mxu0 0.0
    %399 = vmatprep.subr.mxu0 0.0
    %400 = vmatpush2.msra.mxu0 0.0
    %401 = vmatprep.subr.mxu0 0.0
    %402 = vmatpush2.msra.mxu0 0.0
    %403 = vmatprep.subr.mxu0 0.0
    %404 = vmatpush2.msra.mxu0 0.0
    %405 = vmatprep.subr.mxu0 0.0
    %406 = vmatpush2.msra.mxu0 0.0
    %407 = vmatprep.subr.mxu0 0.0
    %408 = vmatpush2.msra.mxu0 0.0
    %409 = vmatprep.subr.mxu0 0.0
    %410 = vmatpush2.msra.mxu0 0.0
    %411 = vmatprep.subr.mxu0 0.0
    %412 = vmatpush2.msra.mxu0 0.0
    %413 = vmatprep.subr.mxu0 0.0
    %414 = vmatpush2.msra.mxu0 0.0
    %415 = vmatprep.subr.mxu0 0.0
    %416 = vmatpush2.msra.mxu0 0.0
    %417 = vmatprep.subr.mxu0 0.0
    %418 = vmatpush2.msra.mxu0 0.0
    %419 = vmatprep.subr.mxu0 0.0
    %420 = vmatpush2.msra.mxu0 0.0
    %421 = vmatprep.mubr.f32.mxu0 0.0
    %422 = vmatmul.mubr.f32.gmra.mxu0 %v355
    %v423 = vpop.f32.mrf.mxu0
    %v424 = vadd.f32 %v121, %v423
    %v425 = vpop.f32.mrf.mxu0
    %426 = vdwg.mxu0
    %v427 = vtanh.pop %v424
    %v429 = vrot.slane %v121, 2
    %v432 = vsel %vm127, %v427, 0
    %434 = vmatprep.subr.mxu0 0.0
    %435 = vmatpush1.msra.mxu0 0.0
    %436 = vmatprep.subr.mxu0 0.0
    %437 = vmatpush1.msra.mxu0 0.0
    %438 = vmatprep.subr.mxu0 0.0
    %439 = vmatpush1.msra.mxu0 0.0
    %440 = vmatprep.subr.mxu0 0.0
    %441 = vmatpush1.msra.mxu0 0.0
    %442 = vmatprep.subr.mxu0 0.0
    %443 = vmatpush1.msra.mxu0 0.0
    %444 = vmatprep.subr.mxu0 0.0
    %445 = vmatpush1.msra.mxu0 0.0
    %446 = vmatprep.subr.mxu0 0.0
    %447 = vmatpush1.msra.mxu0 0.0
    %448 = vmatprep.subr.mxu0 0.0
    %449 = vmatpush1.msra.mxu0 0.0
    %450 = vmatprep.subr.mxu0 0.0
    %451 = vmatpush1.msra.mxu0 %v24
    %452 = vmatprep.subr.mxu0 0.0
    %453 = vmatpush1.msra.mxu0 %v23
    %454 = vmatprep.subr.mxu0 0.0
    %455 = vmatpush1.msra.mxu0 %v22
    %456 = vmatprep.subr.mxu0 0.0
    %457 = vmatpush1.msra.mxu0 %v21
    %458 = vmatprep.subr.mxu0 0.0
    %459 = vmatpush1.msra.mxu0 %v20
    %460 = vmatprep.subr.mxu0 0.0
    %461 = vmatpush1.msra.mxu0 %v19
    %462 = vmatprep.subr.mxu0 0.0
    %463 = vmatpush1.msra.mxu0 %v18
    %464 = vmatprep.subr.mxu0 0.0
    %465 = vmatpush1.msra.mxu0 %v17
    %466 = vmatprep.subr.mxu0 0.0
    %467 = vmatpush2.msra.mxu0 0.0
    %468 = vmatprep.subr.mxu0 0.0
    %469 = vmatpush2.msra.mxu0 0.0
    %470 = vmatprep.subr.mxu0 0.0
    %471 = vmatpush2.msra.mxu0 0.0
    %472 = vmatprep.subr.mxu0 0.0
    %473 = vmatpush2.msra.mxu0 0.0
    %474 = vmatprep.subr.mxu0 0.0
    %475 = vmatpush2.msra.mxu0 0.0
    %476 = vmatprep.subr.mxu0 0.0
    %477 = vmatpush2.msra.mxu0 0.0
    %478 = vmatprep.subr.mxu0 0.0
    %479 = vmatpush2.msra.mxu0 0.0
    %480 = vmatprep.subr.mxu0 0.0
    %481 = vmatpush2.msra.mxu0 0.0
    %482 = vmatprep.subr.mxu0 0.0
    %483 = vmatpush2.msra.mxu0 0.0
    %484 = vmatprep.subr.mxu0 0.0
    %485 = vmatpush2.msra.mxu0 0.0
    %486 = vmatprep.subr.mxu0 0.0
    %487 = vmatpush2.msra.mxu0 0.0
    %488 = vmatprep.subr.mxu0 0.0
    %489 = vmatpush2.msra.mxu0 0.0
    %490 = vmatprep.subr.mxu0 0.0
    %491 = vmatpush2.msra.mxu0 0.0
    %492 = vmatprep.subr.mxu0 0.0
    %493 = vmatpush2.msra.mxu0 0.0
    %494 = vmatprep.subr.mxu0 0.0
    %495 = vmatpush2.msra.mxu0 0.0
    %496 = vmatprep.subr.mxu0 0.0
    %497 = vmatpush2.msra.mxu0 0.0
    %498 = vmatprep.mubr.f32.mxu0 0.0
    %499 = vmatmul.mubr.f32.gmra.mxu0 %v432
    %v500 = vpop.f32.mrf.mxu0
    %v501 = vadd.f32 %v429, %v500
    %v502 = vpop.f32.mrf.mxu0
    %503 = vdwg.mxu0
    %v504 = vtanh.pop %v501
    %v505 = vrot.slane %v121, 4
    %v508 = vsel %vm127, %v504, 0
    %510 = vmatprep.subr.mxu0 0.0
    %511 = vmatpush1.msra.mxu0 0.0
    %512 = vmatprep.subr.mxu0 0.0
    %513 = vmatpush1.msra.mxu0 0.0
    %514 = vmatprep.subr.mxu0 0.0
    %515 = vmatpush1.msra.mxu0 0.0
    %516 = vmatprep.subr.mxu0 0.0
    %517 = vmatpush1.msra.mxu0 0.0
    %518 = vmatprep.subr.mxu0 0.0
    %519 = vmatpush1.msra.mxu0 0.0
    %520 = vmatprep.subr.mxu0 0.0
    %521 = vmatpush1.msra.mxu0 0.0
    %522 = vmatprep.subr.mxu0 0.0
    %523 = vmatpush1.msra.mxu0 0.0
    %524 = vmatprep.subr.mxu0 0.0
    %525 = vmatpush1.msra.mxu0 0.0
    %526 = vmatprep.subr.mxu0 0.0
    %527 = vmatpush1.msra.mxu0 %v24
    %528 = vmatprep.subr.mxu0 0.0
    %529 = vmatpush1.msra.mxu0 %v23
    %530 = vmatprep.subr.mxu0 0.0
    %531 = vmatpush1.msra.mxu0 %v22
    %532 = vmatprep.subr.mxu0 0.0
    %533 = vmatpush1.msra.mxu0 %v21
    %534 = vmatprep.subr.mxu0 0.0
    %535 = vmatpush1.msra.mxu0 %v20
    %536 = vmatprep.subr.mxu0 0.0
    %537 = vmatpush1.msra.mxu0 %v19
    %538 = vmatprep.subr.mxu0 0.0
    %539 = vmatpush1.msra.mxu0 %v18
    %540 = vmatprep.subr.mxu0 0.0
    %541 = vmatpush1.msra.mxu0 %v17
    %542 = vmatprep.subr.mxu0 0.0
    %543 = vmatpush2.msra.mxu0 0.0
    %544 = vmatprep.subr.mxu0 0.0
    %545 = vmatpush2.msra.mxu0 0.0
    %546 = vmatprep.subr.mxu0 0.0
    %547 = vmatpush2.msra.mxu0 0.0
    %548 = vmatprep.subr.mxu0 0.0
    %549 = vmatpush2.msra.mxu0 0.0
    %550 = vmatprep.subr.mxu0 0.0
    %551 = vmatpush2.msra.mxu0 0.0
    %552 = vmatprep.subr.mxu0 0.0
    %553 = vmatpush2.msra.mxu0 0.0
    %554 = vmatprep.subr.mxu0 0.0
    %555 = vmatpush2.msra.mxu0 0.0
    %556 = vmatprep.subr.mxu0 0.0
    %557 = vmatpush2.msra.mxu0 0.0
    %558 = vmatprep.subr.mxu0 0.0
    %559 = vmatpush2.msra.mxu0 0.0
    %560 = vmatprep.subr.mxu0 0.0
    %561 = vmatpush2.msra.mxu0 0.0
    %562 = vmatprep.subr.mxu0 0.0
    %563 = vmatpush2.msra.mxu0 0.0
    %564 = vmatprep.subr.mxu0 0.0
    %565 = vmatpush2.msra.mxu0 0.0
    %566 = vmatprep.subr.mxu0 0.0
    %567 = vmatpush2.msra.mxu0 0.0
    %568 = vmatprep.subr.mxu0 0.0
    %569 = vmatpush2.msra.mxu0 0.0
    %570 = vmatprep.subr.mxu0 0.0
    %571 = vmatpush2.msra.mxu0 0.0
    %572 = vmatprep.subr.mxu0 0.0
    %573 = vmatpush2.msra.mxu0 0.0
    %574 = vmatprep.mubr.f32.mxu0 0.0
    %575 = vmatmul.mubr.f32.gmra.mxu0 %v508
    %v576 = vpop.f32.mrf.mxu0
    %v577 = vadd.f32 %v505, %v576
    %v578 = vpop.f32.mrf.mxu0
    %579 = vdwg.mxu0
    %v580 = vtanh.pop %v577
    %v581 = vrot.slane %v121, 6
    %v584 = vsel %vm127, %v580, 0
    %586 = vmatprep.subr.mxu0 0.0
    %587 = vmatpush1.msra.mxu0 0.0
    %588 = vmatprep.subr.mxu0 0.0
    %589 = vmatpush1.msra.mxu0 0.0
    %590 = vmatprep.subr.mxu0 0.0
    %591 = vmatpush1.msra.mxu0 0.0
    %592 = vmatprep.subr.mxu0 0.0
    %593 = vmatpush1.msra.mxu0 0.0
    %594 = vmatprep.subr.mxu0 0.0
    %595 = vmatpush1.msra.mxu0 0.0
    %596 = vmatprep.subr.mxu0 0.0
    %597 = vmatpush1.msra.mxu0 0.0
    %598 = vmatprep.subr.mxu0 0.0
    %599 = vmatpush1.msra.mxu0 0.0
    %600 = vmatprep.subr.mxu0 0.0
    %601 = vmatpush1.msra.mxu0 0.0
    %602 = vmatprep.subr.mxu0 0.0
    %603 = vmatpush1.msra.mxu0 %v24
    %604 = vmatprep.subr.mxu0 0.0
    %605 = vmatpush1.msra.mxu0 %v23
    %606 = vmatprep.subr.mxu0 0.0
    %607 = vmatpush1.msra.mxu0 %v22
    %608 = vmatprep.subr.mxu0 0.0
    %609 = vmatpush1.msra.mxu0 %v21
    %610 = vmatprep.subr.mxu0 0.0
    %611 = vmatpush1.msra.mxu0 %v20
    %612 = vmatprep.subr.mxu0 0.0
    %613 = vmatpush1.msra.mxu0 %v19
    %614 = vmatprep.subr.mxu0 0.0
    %615 = vmatpush1.msra.mxu0 %v18
    %616 = vmatprep.subr.mxu0 0.0
    %617 = vmatpush1.msra.mxu0 %v17
    %618 = vmatprep.subr.mxu0 0.0
    %619 = vmatpush2.msra.mxu0 0.0
    %620 = vmatprep.subr.mxu0 0.0
    %621 = vmatpush2.msra.mxu0 0.0
    %622 = vmatprep.subr.mxu0 0.0
    %623 = vmatpush2.msra.mxu0 0.0
    %624 = vmatprep.subr.mxu0 0.0
    %625 = vmatpush2.msra.mxu0 0.0
    %626 = vmatprep.subr.mxu0 0.0
    %627 = vmatpush2.msra.mxu0 0.0
    %628 = vmatprep.subr.mxu0 0.0
    %629 = vmatpush2.msra.mxu0 0.0
    %630 = vmatprep.subr.mxu0 0.0
    %631 = vmatpush2.msra.mxu0 0.0
    %632 = vmatprep.subr.mxu0 0.0
    %633 = vmatpush2.msra.mxu0 0.0
    %634 = vmatprep.subr.mxu0 0.0
    %635 = vmatpush2.msra.mxu0 0.0
    %636 = vmatprep.subr.mxu0 0.0
    %637 = vmatpush2.msra.mxu0 0.0
    %638 = vmatprep.subr.mxu0 0.0
    %639 = vmatpush2.msra.mxu0 0.0
    %640 = vmatprep.subr.mxu0 0.0
    %641 = vmatpush2.msra.mxu0 0.0
    %642 = vmatprep.subr.mxu0 0.0
    %643 = vmatpush2.msra.mxu0 0.0
    %644 = vmatprep.subr.mxu0 0.0
    %645 = vmatpush2.msra.mxu0 0.0
    %646 = vmatprep.subr.mxu0 0.0
    %647 = vmatpush2.msra.mxu0 0.0
    %648 = vmatprep.subr.mxu0 0.0
    %649 = vmatpush2.msra.mxu0 0.0
    %650 = vmatprep.mubr.f32.mxu0 0.0
    %651 = vmatmul.mubr.f32.gmra.mxu0 %v584
    %v652 = vpop.f32.mrf.mxu0
    %v653 = vadd.f32 %v581, %v652
    %v654 = vpop.f32.mrf.mxu0
    %655 = vdwg.mxu0
    %v656 = vtanh.pop %v653
    %v658 = vsel %vm127, %v656, 0
    %660 = vmatprep.subr.mxu0 0.0
    %661 = vmatpush1.msra.mxu0 0.0
    %662 = vmatprep.subr.mxu0 0.0
    %663 = vmatpush1.msra.mxu0 0.0
    %664 = vmatprep.subr.mxu0 0.0
    %665 = vmatpush1.msra.mxu0 0.0
    %666 = vmatprep.subr.mxu0 0.0
    %667 = vmatpush1.msra.mxu0 0.0
    %668 = vmatprep.subr.mxu0 0.0
    %669 = vmatpush1.msra.mxu0 0.0
    %670 = vmatprep.subr.mxu0 0.0
    %671 = vmatpush1.msra.mxu0 0.0
    %672 = vmatprep.subr.mxu0 0.0
    %673 = vmatpush1.msra.mxu0 0.0
    %674 = vmatprep.subr.mxu0 0.0
    %675 = vmatpush1.msra.mxu0 0.0
    %676 = vmatprep.subr.mxu0 0.0
    %677 = vmatpush1.msra.mxu0 %v24
    %678 = vmatprep.subr.mxu0 0.0
    %679 = vmatpush1.msra.mxu0 %v23
    %680 = vmatprep.subr.mxu0 0.0
    %681 = vmatpush1.msra.mxu0 %v22
    %682 = vmatprep.subr.mxu0 0.0
    %683 = vmatpush1.msra.mxu0 %v21
    %684 = vmatprep.subr.mxu0 0.0
    %685 = vmatpush1.msra.mxu0 %v20
    %686 = vmatprep.subr.mxu0 0.0
    %687 = vmatpush1.msra.mxu0 %v19
    %688 = vmatprep.subr.mxu0 0.0
    %689 = vmatpush1.msra.mxu0 %v18
    %690 = vmatprep.subr.mxu0 0.0
    %691 = vmatpush1.msra.mxu0 %v17
    %692 = vmatprep.subr.mxu0 0.0
    %693 = vmatpush2.msra.mxu0 0.0
    %694 = vmatprep.subr.mxu0 0.0
    %695 = vmatpush2.msra.mxu0 0.0
    %696 = vmatprep.subr.mxu0 0.0
    %697 = vmatpush2.msra.mxu0 0.0
    %698 = vmatprep.subr.mxu0 0.0
    %699 = vmatpush2.msra.mxu0 0.0
    %700 = vmatprep.subr.mxu0 0.0
    %701 = vmatpush2.msra.mxu0 0.0
    %702 = vmatprep.subr.mxu0 0.0
    %703 = vmatpush2.msra.mxu0 0.0
    %704 = vmatprep.subr.mxu0 0.0
    %705 = vmatpush2.msra.mxu0 0.0
    %706 = vmatprep.subr.mxu0 0.0
    %707 = vmatpush2.msra.mxu0 0.0
    %708 = vmatprep.subr.mxu0 0.0
    %709 = vmatpush2.msra.mxu0 0.0
    %710 = vmatprep.subr.mxu0 0.0
    %711 = vmatpush2.msra.mxu0 0.0
    %712 = vmatprep.subr.mxu0 0.0
    %713 = vmatpush2.msra.mxu0 0.0
    %714 = vmatprep.subr.mxu0 0.0
    %715 = vmatpush2.msra.mxu0 0.0
    %716 = vmatprep.subr.mxu0 0.0
    %717 = vmatpush2.msra.mxu0 0.0
    %718 = vmatprep.subr.mxu0 0.0
    %719 = vmatpush2.msra.mxu0 0.0
    %720 = vmatprep.subr.mxu0 0.0
    %721 = vmatpush2.msra.mxu0 0.0
    %722 = vmatprep.subr.mxu0 0.0
    %723 = vmatpush2.msra.mxu0 0.0
    %724 = vmatprep.mubr.f32.mxu0 0.0
    %725 = vmatmul.mubr.f32.gmra.mxu0 %v658
    %v726 = vpop.f32.mrf.mxu0
    %v727 = vadd.f32 0.0, %v726
    %v728 = vpop.f32.mrf.mxu0
    %729 = vdwg.mxu0
    %v730 = vadd.f32 %v727, %v36
    %v731 = vtanh.pop %v730
    %v732 = vsel %vm119, %v656, %v731
    %vm733 = vcmask 254976
    %734 = vst.msk [vmem:[#allocation4] sm:$0x3] %vm733, %v732
    %736 = vrot.lane.b32.xlu0 %v732, 96
    %v737 = vpop.permute.xlu0 %736
    %s739 = scalar_lea.vmem [#allocation4], 2
    %740 = vst.msk [vmem:[%s739] sm:$0x3] %vm733, %v737
    %v741 = vrot.slane %v277, 6
    %v743 = vrot.slane %v353, 4
    %v745 = vrot.slane %v427, 2
    %v747 = vrot.slane %v580, 6
    %v749 = vrot.slane %v656, 4
    %v751 = vrot.slane %v732, 2
    %vm753 = vcmask 1041408
    %v754 = vsel %vm753, %v201, %v741
    %vm755 = vcmask 1043456
    %v756 = vsel %vm755, %v754, %v743
    %vm757 = vcmask 1045504
    %v758 = vsel %vm757, %v756, %v745
    %v759 = vsel %vm753, %v504, %v747
    %v760 = vsel %vm755, %v759, %v749
    %v761 = vsel %vm757, %v760, %v751
    %v762 = vlaneseq
    %v763 = vshrl.u32 %v762, 7
    %v764 = vsub.s32 0, %v763
    %v765 = vrot.slane %v30, %v764
    %768 = vrot.lane.b32.xlu0 %v758, 96
    %v769 = vpop.permute.xlu0 %768
    %770 = vrot.lane.b32.xlu0 %v761, 96
    %v771 = vpop.permute.xlu0 %770
    %v772 = vsel %vm119, %v769, 0
    %v774 = vsel %vm119, %v771, 0
    %776 = vmatprep.subr.mxu0 0.0
    %777 = vmatpush1.msra.mxu0 0.0
    %778 = vmatprep.subr.mxu0 0.0
    %779 = vmatpush1.msra.mxu0 0.0
    %780 = vmatprep.subr.mxu0 0.0
    %781 = vmatpush1.msra.mxu0 0.0
    %782 = vmatprep.subr.mxu0 0.0
    %783 = vmatpush1.msra.mxu0 0.0
    %784 = vmatprep.subr.mxu0 0.0
    %785 = vmatpush1.msra.mxu0 0.0
    %786 = vmatprep.subr.mxu0 0.0
    %787 = vmatpush1.msra.mxu0 0.0
    %788 = vmatprep.subr.mxu0 0.0
    %789 = vmatpush1.msra.mxu0 0.0
    %790 = vmatprep.subr.mxu0 0.0
    %791 = vmatpush1.msra.mxu0 0.0
    %792 = vmatprep.subr.mxu0 0.0
    %793 = vmatpush1.msra.mxu0 0.0
    %794 = vmatprep.subr.mxu0 0.0
    %795 = vmatpush1.msra.mxu0 0.0
    %796 = vmatprep.subr.mxu0 0.0
    %797 = vmatpush1.msra.mxu0 0.0
    %798 = vmatprep.subr.mxu0 0.0
    %799 = vmatpush1.msra.mxu0 0.0
    %800 = vmatprep.subr.mxu0 0.0
    %801 = vmatpush1.msra.mxu0 %v28
    %802 = vmatprep.subr.mxu0 0.0
    %803 = vmatpush1.msra.mxu0 %v27
    %804 = vmatprep.subr.mxu0 0.0
    %805 = vmatpush1.msra.mxu0 %v26
    %806 = vmatprep.subr.mxu0 0.0
    %807 = vmatpush1.msra.mxu0 %v25
    %808 = vmatprep.subr.mxu0 0.0
    %809 = vmatpush2.msra.mxu0 0.0
    %810 = vmatprep.subr.mxu0 0.0
    %811 = vmatpush2.msra.mxu0 0.0
    %812 = vmatprep.subr.mxu0 0.0
    %813 = vmatpush2.msra.mxu0 0.0
    %814 = vmatprep.subr.mxu0 0.0
    %815 = vmatpush2.msra.mxu0 0.0
    %816 = vmatprep.subr.mxu0 0.0
    %817 = vmatpush2.msra.mxu0 0.0
    %818 = vmatprep.subr.mxu0 0.0
    %819 = vmatpush2.msra.mxu0 0.0
    %820 = vmatprep.subr.mxu0 0.0
    %821 = vmatpush2.msra.mxu0 0.0
    %822 = vmatprep.subr.mxu0 0.0
    %823 = vmatpush2.msra.mxu0 0.0
    %824 = vmatprep.subr.mxu0 0.0
    %825 = vmatpush2.msra.mxu0 0.0
    %826 = vmatprep.subr.mxu0 0.0
    %827 = vmatpush2.msra.mxu0 0.0
    %828 = vmatprep.subr.mxu0 0.0
    %829 = vmatpush2.msra.mxu0 0.0
    %830 = vmatprep.subr.mxu0 0.0
    %831 = vmatpush2.msra.mxu0 0.0
    %832 = vmatprep.subr.mxu0 0.0
    %833 = vmatpush2.msra.mxu0 0.0
    %834 = vmatprep.subr.mxu0 0.0
    %835 = vmatpush2.msra.mxu0 0.0
    %836 = vmatprep.subr.mxu0 0.0
    %837 = vmatpush2.msra.mxu0 0.0
    %838 = vmatprep.subr.mxu0 0.0
    %839 = vmatpush2.msra.mxu0 0.0
    %840 = vmatprep.mubr.f32.mxu0 0.0
    %841 = vmatmul.mubr.f32.gmra.mxu0 %v772
    %v842 = vpop.f32.mrf.mxu0
    %v843 = vadd.f32 %v765, %v842
    %v844 = vpop.f32.mrf.mxu0
    %845 = vmatprep.mubr.f32.mxu0 0.0
    %846 = vmatmul.mubr.f32.gmra.mxu0 %v774
    %v847 = vpop.f32.mrf.mxu0
    %v848 = vadd.f32 %v765, %v847
    %v849 = vpop.f32.mrf.mxu0
    %850 = vdwg.mxu0
    %851 = vst.msk [vmem:[#allocation2] sm:$0xff] %vm37, %v843
    %852 = vst.msk [vmem:[#allocation2 + $0x8] sm:$0xff] %vm37, %v848
    // Predicated region
    $region10: #{tpu_custom_call.1} parent=1 // pred_check
      _
    $region11: #{tpu_custom_call.1} parent=1 // pred_check_branch
      %854 = sbr.rel (0) target = $region13
    $region12: #{tpu_custom_call.1} parent=1 // pred_region
      %s856 = ssub.s32 256, 256
      %857 = vsyncadd [#allocation3], %s856
      %s858 = sshll.u32 [#allocation2], 4
      %s859 = int_to_ptr.vmem [resolvable:$true] %s858
      %864 = dma.vmem_to_hbm [thread:$0]  %s859, 256, %s2, [#allocation3], 128, 128, 8
    $region13: #{tpu_custom_call.1} parent=1 // pred_fallthru
      _
    // Predicated region
    $region14: #{tpu_custom_call.1} parent=1 // pred_check
      _
    $region15: #{tpu_custom_call.1} parent=1 // pred_check_branch
      %866 = sbr.rel (0) target = $region17
    $region16: #{tpu_custom_call.1} parent=1 // pred_region
      %s868 = ssub.s32 64, 64
      %869 = vsyncadd [#allocation5], %s868
      %s870 = sshll.u32 [#allocation4], 4
      %s871 = int_to_ptr.vmem [resolvable:$true] %s870
      %876 = dma.vmem_to_hbm [thread:$0]  %s871, 64, %s3, [#allocation5], 32, 32, 2
    $region17: #{tpu_custom_call.1} parent=1 // pred_fallthru
      _
    // Predicated region
    $region18: #{tpu_custom_call.1} parent=1 // pred_check
      _
    $region19: #{tpu_custom_call.1} parent=1 // pred_check_branch
      %878 = sbr.rel (0) target = $region21
    $region20: #{tpu_custom_call.1} parent=1 // pred_region
      %879 = dma.done [#allocation3], 256
    $region21: #{tpu_custom_call.1} parent=1 // pred_fallthru
      _
    // Predicated region
    $region22: #{tpu_custom_call.1} parent=1 // pred_check
      _
    $region23: #{tpu_custom_call.1} parent=1 // pred_check_branch
      %881 = sbr.rel (0) target = $region25
    $region24: #{tpu_custom_call.1} parent=1 // pred_region
      %882 = dma.done [#allocation5], 64
    $region25: #{tpu_custom_call.1} parent=1 // pred_fallthru
      _
    %883 = vsyncpa [#allocation3], 1
    %884 = vsyncpa [#allocation5], 1

</llo_original>
